<compile_context>
chip_gen: v7x
topology: tpu7x:2x2x1
jax: 0.10.0
libtpu: 0.0.40
codegen_flags: <defaults>
</compile_context>

<pallas_src>
from functools import partial

import jax
import jax.numpy as jnp
from jax.experimental import pallas as pl
from jax.experimental.pallas import tpu as pltpu


# ----------------------------- Pallas kernel -------------------------------- #

def _spatial_softmax_kernel(x_ref, map_ref, o_ref):
    # x_ref: (TM, S) input dtype, map_ref: (1, S) f32, o_ref: (TM, 1) f32
    x = x_ref[...].astype(jnp.float32)
    m = jnp.max(x, axis=-1, keepdims=True)            # (TM, 1)
    p = jnp.exp(x - m)                                 # (TM, S) unnormalized softmax
    denom = jnp.sum(p, axis=-1, keepdims=True)         # (TM, 1)
    num = jnp.sum(p * map_ref[...], axis=-1, keepdims=True)   # (TM, 1)
    # Scale after the reduction: TM cheap divides instead of TM*S.
    o_ref[...] = num / denom


# ----------------------------- tiling helpers ------------------------------- #

def _round_up(a, b):
    return ((a + b - 1) // b) * b


def _vmem_limit_bytes():
    """Per-generation VMEM budget (v5e/v6e: 128 MiB, v7x: 64 MiB per TC)."""
    try:
        cap = int(pltpu.get_tpu_info().vmem_capacity_bytes)
    except Exception:
        cap = 64 * 1024 * 1024          # smallest (v7x per-TensorCore) -> safe
    return (cap * 3) // 4                # leave headroom for Mosaic scratch


def _choose_row_tile(BC, S, in_itemsize, vmem_limit, input_buffers):
    """Largest row tile whose multi-buffered block + f32 temporaries fit VMEM."""
    usable = max(vmem_limit - (2 << 20), 1 << 20)       # maps/outputs/misc headroom
    # input_buffers pipelined copies of the x block + ~2 f32 temps (cast, exp).
    per_row = S * (input_buffers * in_itemsize + 2 * 4)
    tm = usable // per_row
    tm = min(tm, 1024)                                   # diminishing returns past ~1K rows
    if BC >= 64:
        # keep >= 2 grid steps so v7x can shard the parallel axis over 2 TCs
        tm = min(tm, _round_up((BC + 1) // 2, 8))
    tm = min(tm, _round_up(BC, 8))
    base = 16 if tm >= 16 else 8                         # bf16 packs 16 sublanes / vreg
    tm = max((tm // base) * base, 8)
    # TODO(synk): for extremely large S (per-row block alone > VMEM) the spatial
    # axis would also need tiling with a two-pass online softmax; not needed here.
    return int(tm)


# ----------------------------- wrappers -------------------------------------- #

def make_maps(num_rows, num_cols):
    """Replicates SpatialSoftmax.__init__ (including its y_map := x_map bug)."""
    i = jnp.arange(num_rows, dtype=jnp.float32)[:, None]
    x_map = jnp.broadcast_to((i - num_rows / 2.0) / num_rows, (num_rows, num_cols))
    x_map_flat = x_map.reshape(-1)
    y_map_flat = x_map_flat          # faithful to the PyTorch code (bug): y_map = x_map
    return x_map_flat, y_map_flat


def spatial_softmax(x, map_flat, *, input_buffers=2):
    """x: (B, C, H, W) f32/bf16 -> (B, 2*C) f32, matching SpatialSoftmax.forward.

    Since the reference module aliases y_map to x_map, fp_y == fp_x; the kernel
    computes the reduction once and the result is duplicated here.
    """
    B, C, H, W = x.shape
    S = H * W
    BC = B * C

    in_dtype = x.dtype if x.dtype in (jnp.bfloat16, jnp.float32) else jnp.float32
    x_rows = x.reshape(BC, S).astype(in_dtype)

    vmem_limit = _vmem_limit_bytes()
    tm = _choose_row_tile(BC, S, jnp.dtype(in_dtype).itemsize, vmem_limit, input_buffers)

    BC_pad = _round_up(BC, tm)
    if BC_pad != BC:
        # zero rows -> uniform softmax, finite, sliced off below
        x_rows = jnp.pad(x_rows, ((0, BC_pad - BC), (0, 0)))

    maps = map_flat.reshape(1, S).astype(jnp.float32)
    grid = (BC_pad // tm,)

    x_spec_kwargs = {}
    if input_buffers > 2:                     # deeper buffering (e.g. v7x) on request
        x_spec_kwargs["pipeline_mode"] = pl.Buffered(input_buffers)

    fp = pl.pallas_call(
        _spatial_softmax_kernel,
        out_shape=jax.ShapeDtypeStruct((BC_pad, 1), jnp.float32),
        grid_spec=pltpu.PrefetchScalarGridSpec(
            num_scalar_prefetch=0,
            grid=grid,
            in_specs=[
                pl.BlockSpec((tm, S), lambda i: (i, 0), **x_spec_kwargs),
                pl.BlockSpec((1, S), lambda i: (0, 0)),
            ],
            out_specs=pl.BlockSpec((tm, 1), lambda i: (i, 0)),
        ),
        compiler_params=pltpu.CompilerParams(
            dimension_semantics=("parallel",),
            vmem_limit_bytes=int(vmem_limit),
        ),
    )(x_rows, maps)

    fp = fp[:BC].reshape(B, C)
    # y_map is aliased to x_map in the reference module, so fp_y == fp_x.
    return jnp.concatenate([fp, fp], axis=1)


# -------------------- full VisionNetwork forward (spec) ---------------------- #
# TODO(synk): the strided Conv2d stack and the two Linear layers are delegated
# to XLA (lax.conv_general_dilated / jnp matmul) — dense conv/GEMM is already
# optimal there; the hand-written Pallas kernel covers the fused SpatialSoftmax.

def init_vision_params(key):
    ks = jax.random.split(key, 10)

    def conv_w(k, o, i, kh, kw):
        return jax.random.normal(k, (o, i, kh, kw), jnp.float32) / jnp.sqrt(i * kh * kw)

    def lin_w(k, o, i):
        return jax.random.normal(k, (o, i), jnp.float32) / jnp.sqrt(i)

    return {
        "w1": conv_w(ks[0], 32, 3, 8, 8),  "b1": 0.01 * jax.random.normal(ks[1], (32,)),
        "w2": conv_w(ks[2], 64, 32, 4, 4), "b2": 0.01 * jax.random.normal(ks[3], (64,)),
        "w3": conv_w(ks[4], 64, 64, 3, 3), "b3": 0.01 * jax.random.normal(ks[5], (64,)),
        "fc1_w": lin_w(ks[6], 512, 128),   "fc1_b": 0.01 * jax.random.normal(ks[7], (512,)),
        "fc2_w": lin_w(ks[8], 64, 512),    "fc2_b": 0.01 * jax.random.normal(ks[9], (64,)),
    }


def _conv(x, w, b, stride):
    y = jax.lax.conv_general_dilated(
        x, w, window_strides=(stride, stride), padding="VALID",
        dimension_numbers=("NCHW", "OIHW", "NCHW"))
    return y + b[None, :, None, None]


@partial(jax.jit, static_argnames=("use_pallas",))
def vision_network_forward(params, img, use_pallas=True):
    x = jax.nn.relu(_conv(img, params["w1"], params["b1"], 4))
    x = jax.nn.relu(_conv(x, params["w2"], params["b2"], 2))
    x = jax.nn.relu(_conv(x, params["w3"], params["b3"], 1))
    B, C, Hc, Wc = x.shape                      # 300x300 input -> Hc = Wc = 34, C = 64
    x_map_flat, y_map_flat = make_maps(Hc, Wc)
    if use_pallas:
        feat = spatial_softmax(x, x_map_flat)   # (B, 2*C) == (B, 128)
    else:
        xr = x.reshape(B, C, Hc * Wc)
        soft = jax.nn.softmax(xr, axis=2)
        feat = jnp.concatenate([soft @ x_map_flat, soft @ y_map_flat], axis=1)
    h = jax.nn.relu(feat @ params["fc1_w"].T + params["fc1_b"])
    return h @ params["fc2_w"].T + params["fc2_b"]


# ----------------------------------- main ------------------------------------ #

if __name__ == "__main__":
    key = jax.random.PRNGKey(0)
    k_x, k_img, k_p = jax.random.split(key, 3)

    # 1) SpatialSoftmax Pallas kernel on its own (small shape), f32 and bf16 paths.
    B, C, H, W = 2, 4, 16, 16
    x = jax.random.normal(k_x, (B, C, H, W), dtype=jnp.float32)
    x_map_flat, y_map_flat = make_maps(H, W)

    out = jax.block_until_ready(spatial_softmax(x, x_map_flat))
    xr = x.reshape(B, C, H * W)
    soft = jax.nn.softmax(xr, axis=2)
    ref = jnp.concatenate([soft @ x_map_flat, soft @ y_map_flat], axis=1)
    assert out.shape == (B, 2 * C)
    assert jnp.allclose(out, ref, atol=1e-5, rtol=1e-5)

    # bf16 input path (input DMA'd as bf16, cast in-kernel); compare against a
    # reference computed on the same bf16-rounded logits.
    xb = x.astype(jnp.bfloat16)
    out_b = jax.block_until_ready(spatial_softmax(xb, x_map_flat))
    soft_b = jax.nn.softmax(xb.astype(jnp.float32).reshape(B, C, H * W), axis=2)
    ref_b = jnp.concatenate([soft_b @ x_map_flat, soft_b @ y_map_flat], axis=1)
    assert jnp.allclose(out_b, ref_b, atol=1e-5, rtol=1e-5)

    # 2) Full VisionNetwork forward (convs/linears via XLA, SpatialSoftmax via Pallas).
    params = init_vision_params(k_p)
    img = jax.random.normal(k_img, (2, 3, 300, 300), dtype=jnp.float32)
    y_pallas = jax.block_until_ready(vision_network_forward(params, img, use_pallas=True))
    y_ref = jax.block_until_ready(vision_network_forward(params, img, use_pallas=False))
    assert y_pallas.shape == (2, 64)
    assert jnp.allclose(y_pallas, y_ref, atol=1e-4, rtol=1e-4)

    print("KERNEL_OK")
</pallas_src>

<mosaic_0001>
module attributes {stable_mosaic.version = 11 : i64} {
  func.func @_spatial_softmax_kernel(%arg0: i32, %arg1: memref<8x256xf32, #tpu.memory_space<vmem>>, %arg2: memref<1x256xf32, #tpu.memory_space<vmem>>, %arg3: memref<8x1xf32, #tpu.memory_space<vmem>>) attributes {dimension_semantics = [#tpu.dimension_semantics<parallel>], iteration_bounds = array<i64: 1>, scalar_prefetch = 0 : i64, scratch_operands = 0 : i64, tpu.core_type = #tpu.core_type<tc>, window_params = [{transform_indices = @transform_0, window_bounds = array<i64: 8, 256>}, {pipeline_mode = #tpu.pipeline_mode<synchronous>, transform_indices = @transform_1, window_bounds = array<i64: 1, 256>}, {transform_indices = @transform_2, window_bounds = array<i64: 8, 1>}]} {
    %c0 = arith.constant 0 : index
    %c0_0 = arith.constant 0 : index
    %0 = vector.load %arg1[%c0, %c0_0] : memref<8x256xf32, #tpu.memory_space<vmem>>, vector<8x256xf32>
    %cst = arith.constant dense<0xFF800000> : vector<8xf32>
    %1 = vector.multi_reduction <maximumf>, %0, %cst [1] : vector<8x256xf32> to vector<8xf32>
    %2 = vector.shape_cast %1 : vector<8xf32> to vector<8x1xf32>
    %3 = vector.broadcast %2 : vector<8x1xf32> to vector<8x256xf32>
    %4 = arith.subf %0, %3 : vector<8x256xf32>
    %5 = math.exp %4 : vector<8x256xf32>
    %cst_1 = arith.constant dense<0.000000e+00> : vector<8xf32>
    %6 = vector.multi_reduction <add>, %5, %cst_1 [1] : vector<8x256xf32> to vector<8xf32>
    %7 = vector.shape_cast %6 : vector<8xf32> to vector<8x1xf32>
    %c0_2 = arith.constant 0 : index
    %c0_3 = arith.constant 0 : index
    %8 = vector.load %arg2[%c0_2, %c0_3] : memref<1x256xf32, #tpu.memory_space<vmem>>, vector<1x256xf32>
    %9 = vector.broadcast %8 : vector<1x256xf32> to vector<8x256xf32>
    %10 = arith.mulf %5, %9 : vector<8x256xf32>
    %cst_4 = arith.constant dense<0.000000e+00> : vector<8xf32>
    %11 = vector.multi_reduction <add>, %10, %cst_4 [1] : vector<8x256xf32> to vector<8xf32>
    %12 = vector.shape_cast %11 : vector<8xf32> to vector<8x1xf32>
    %13 = arith.divf %12, %7 : vector<8x1xf32>
    %c0_5 = arith.constant 0 : index
    %c0_6 = arith.constant 0 : index
    %14 = vector.load %arg3[%c0_5, %c0_6] : memref<8x1xf32, #tpu.memory_space<vmem>>, vector<8x1xf32>
    tpu.vector_store %arg3[%c0_5, %c0_6], %13 {strides = array<i32>} : memref<8x1xf32, #tpu.memory_space<vmem>>, vector<8x1xf32>,
    return
  }
  func.func @transform_0(%arg0: i32) -> (i32, i32) {
    %c0_i32 = arith.constant 0 : i32
    %c0_i32_0 = arith.constant 0 : i32
    return %arg0, %c0_i32 : i32, i32
  }
  func.func @transform_1(%arg0: i32) -> (i32, i32) {
    %c0_i32 = arith.constant 0 : i32
    %c0_i32_0 = arith.constant 0 : i32
    %c0_i32_1 = arith.constant 0 : i32
    return %c0_i32, %c0_i32_0 : i32, i32
  }
  func.func @transform_2(%arg0: i32) -> (i32, i32) {
    %c0_i32 = arith.constant 0 : i32
    %c0_i32_0 = arith.constant 0 : i32
    return %arg0, %c0_i32 : i32, i32
  }
}

</mosaic_0001>

<llo_original>
// kernel: tpu_custom_call.1
$region0: #{tpu_custom_call.1}
  #allocation0 [shape = 'u32[]', space=smem, size = 0x4, offset = 0x4, fixed_abs, tag = 'smem constant byte address 0x4 - core index']
  #allocation1 [shape = 'u32[144,128]{1,0:T(1,128)}', space=vmem, size = 0x12000, scoped, tag = 'internal scratch']
  %s0 = inlined_call_operand.hbm [shape: f32[8,256], index: 0, kind: input, shape index: {}]
  %s1 = inlined_call_operand.vmem [shape: f32[1,256], index: 1, kind: input, shape index: {}]
  %s2 = inlined_call_operand.vmem [shape: f32[8,1], index: 2, kind: output, shape index: {}]
  %s3 = sld [smem:[#allocation0]]
  $region22: #{tpu_custom_call.1} parent=0
    _
  %s5 = ssub.s32 1, %s3
  %s6 = scalar_select 0, %s5, %s3
  $region1: #{tpu_custom_call.1} parent=0
    #allocation2 [shape = 'u8[8192]{0}', space=vmem, size = 0x2000, scoped, tag = 'input window, operand 0, single buffered']
    #allocation3 [shape = 's32[1]{0}', space=sflag, size = 0x4, scoped, tag = 'scoped memory for tpu_custom_call.1']
    %7 = vsyncpa [#allocation3], 0
    // Predicated region
    $region2: #{tpu_custom_call.1} parent=1 // pred_check
      _
    $region3: #{tpu_custom_call.1} parent=1 // pred_check_branch
      %9 = sbr.rel (0) target = $region5
    $region4: #{tpu_custom_call.1} parent=1 // pred_region
      %s11 = ssub.s32 256, 256
      %12 = vsyncadd [#allocation3], %s11
      %s14 = sshll.u32 [#allocation2], 4
      %s15 = int_to_ptr.vmem [resolvable:$true] %s14
      %17 = dma.hbm_to_vmem [thread:$0]  %s0, 256, %s15, [#allocation3]
    $region5: #{tpu_custom_call.1} parent=1 // pred_fallthru
      _
    // Predicated region
    $region6: #{tpu_custom_call.1} parent=1 // pred_check
      _
    $region7: #{tpu_custom_call.1} parent=1 // pred_check_branch
      %19 = sbr.rel (0) target = $region9
    $region8: #{tpu_custom_call.1} parent=1 // pred_region
      _
    $region9: #{tpu_custom_call.1} parent=1 // pred_fallthru
      _
    // Predicated region
    $region10: #{tpu_custom_call.1} parent=1 // pred_check
      _
    $region11: #{tpu_custom_call.1} parent=1 // pred_check_branch
      %21 = sbr.rel (0) target = $region13
    $region12: #{tpu_custom_call.1} parent=1 // pred_region
      %22 = dma.done [#allocation3], 256
    $region13: #{tpu_custom_call.1} parent=1 // pred_fallthru
      _
    %v23 = vld [vmem:[#allocation2] sm:$0xff]
    %v24 = vld [vmem:[#allocation2 + $0x8] sm:$0xff]
    %v25 = vmax.f32 %v23, %v24
    %26 = vmax.xlane.f32.xlu0 %v25
    %v27 = vpop.xlane.xlu0 %26
    %v28 = vsub.f32 %v23, %v27
    %v29 = vsub.f32 %v24, %v27
    %v30 = vmul.f32 %v28, 1.442695
    %v31 = vpow.pop %v30
    %v32 = vmul.f32 %v29, 1.442695
    %v33 = vpow.pop %v32
    %v34 = vadd.f32 %v31, %v33
    %35 = vadd.xlane.f32.xlu0 %v34
    %v36 = vpop.xlane.xlu0 %35
    %v37 = vld [vmem:[%s1] sm:$0x3]
    %v39 = vlaneseq
    %v40 = vshrl.u32 %v39, 7
    %v41 = vsub.s32 0, %v40
    %v42 = vrot.slane %v37, %v41
    %v43 = vlaneseq
    %v44 = vshrl.u32 %v43, 7
    %v45 = vsub.s32 1, %v44
    %v46 = vrot.slane %v37, %v45
    %v49 = vmul.f32 %v31, %v42
    %v50 = vmul.f32 %v33, %v46
    %v51 = vadd.f32 %v49, %v50
    %52 = vadd.xlane.f32.xlu0 %v51
    %v53 = vpop.xlane.xlu0 %52
    %v54 = vrcp.pop %v36
    %v55 = vmul.f32 %v53, %v54
    %vm56 = vcmask 7168
    %57 = vst.msk [vmem:[%s2] sm:$0xff] %vm56, %v55
    // Predicated region
    $region14: #{tpu_custom_call.1} parent=1 // pred_check
      _
    $region15: #{tpu_custom_call.1} parent=1 // pred_check_branch
      %59 = sbr.rel (0) target = $region17
    $region16: #{tpu_custom_call.1} parent=1 // pred_region
      _
    $region17: #{tpu_custom_call.1} parent=1 // pred_fallthru
      _
    // Predicated region
    $region18: #{tpu_custom_call.1} parent=1 // pred_check
      _
    $region19: #{tpu_custom_call.1} parent=1 // pred_check_branch
      %61 = sbr.rel (0) target = $region21
    $region20: #{tpu_custom_call.1} parent=1 // pred_region
      _
    $region21: #{tpu_custom_call.1} parent=1 // pred_fallthru
      _
    %62 = vsyncpa [#allocation3], 1

</llo_original>
